<compile_context>
chip_gen: v5e
topology: v5e:2x2
jax: 0.10.0
libtpu: 0.0.40
codegen_flags: <defaults>
</compile_context>

<pallas_src>
import functools

import numpy as np
import jax
import jax.numpy as jnp
from jax import lax
from jax.experimental import pallas as pl
from jax.experimental.pallas import tpu as pltpu


def _pad_to(n, m):
    return ((n + m - 1) // m) * m


def _bucket_pow2(n, minimum):
    """Next power of two >= n, at least `minimum` (shape bucketing for jit reuse)."""
    n = max(int(n), 1)
    p = 1 << (n - 1).bit_length()
    return max(p, minimum)


def _pad_and_tile(n, align, tile_max):
    """Pad n up to `align`; if larger than tile_max, tile at tile_max and pad to
    a multiple of it. Returns (n_padded, tile)."""
    n_pad = max(align, _pad_to(int(n), align))
    if n_pad <= tile_max:
        return n_pad, n_pad
    return _pad_to(n_pad, tile_max), tile_max


# ----------------------------------------------------------------------------
# Pallas kernel 1: per-graph color histogram (WLConv.histogram)
#   hist[g, c] = #{nodes n : batch[n] == g and color[n] == c}
# computed as one-hot(batch) @ one-hot(color); both one-hots are built
# in-kernel from int32 id vectors. Grid = (G_tiles, C_tiles, N_tiles), N last
# (reduction axis), (tg, tc) f32 output block resident across N.
# ----------------------------------------------------------------------------
def _hist_kernel(colors_ref, batch_ref, out_ref, *, tg, tc):
    # colors_ref: (tn, 1)  int32  node colors, -1 padding sentinel
    # batch_ref : (1, tn)  int32  node -> graph id, -1 padding sentinel
    # out_ref   : (tg, tc) f32    resident accumulator across the N axis
    @pl.when(pl.program_id(2) == 0)
    def _():
        out_ref[...] = jnp.zeros_like(out_ref)

    g_start = pl.program_id(0) * tg
    c_start = pl.program_id(1) * tc
    colors = colors_ref[...] - c_start            # (tn, 1) cheap shift
    batch = batch_ref[...] - g_start              # (1, tn) cheap shift
    tn = colors.shape[0]
    # Program-id-independent iotas (hoistable constants). -1 sentinels can
    # never match the non-negative iota range, so padding rows contribute 0.
    onehot_c = (lax.broadcasted_iota(jnp.int32, (tn, tc), 1) == colors
                ).astype(jnp.bfloat16)            # (tn, tc)  RHS in MXU layout
    onehot_g = (lax.broadcasted_iota(jnp.int32, (tg, tn), 0) == batch
                ).astype(jnp.bfloat16)            # (tg, tn)  LHS
    # (tg, tn) @ (tn, tc) -> (tg, tc), f32 accumulation => exact integer counts.
    out_ref[...] += jnp.dot(onehot_g, onehot_c,
                            preferred_element_type=jnp.float32)


@functools.lru_cache(maxsize=None)
def _make_hist_fn(G_pad, C_pad, N_pad, tg, tc, tn):
    call = pl.pallas_call(
        functools.partial(_hist_kernel, tg=tg, tc=tc),
        grid=(G_pad // tg, C_pad // tc, N_pad // tn),
        in_specs=[
            pl.BlockSpec((tn, 1), lambda g, c, n: (n, 0)),    # colors column
            pl.BlockSpec((1, tn), lambda g, c, n: (0, n)),    # batch-id row
        ],
        out_specs=pl.BlockSpec((tg, tc), lambda g, c, n: (g, c)),
        out_shape=jax.ShapeDtypeStruct((G_pad, C_pad), jnp.float32),
        compiler_params=pltpu.CompilerParams(
            dimension_semantics=("parallel", "parallel", "arbitrary"),
            vmem_limit_bytes=40 * 1024 * 1024),
    )
    return jax.jit(call)


def _hist_counts_padded(colors, batch, num_graphs, num_colors):
    """Raw integer counts in padded (G_pad, C_pad) f32 form (no normalization,
    no slicing). Only two tiny int32 vectors cross H2D per call."""
    colors = np.asarray(colors, dtype=np.int32)
    batch = np.asarray(batch, dtype=np.int32)
    N = colors.shape[0]

    N_pad, tn = _pad_and_tile(N, 128, 1024)
    G_pad, tg = _pad_and_tile(num_graphs, 16, 512)
    C_pad = _bucket_pow2(num_colors, 128)   # pow2 bucket: reuse compiles as WL colors grow
    tc = min(C_pad, 1024)

    colors_p = np.full((N_pad, 1), -1, dtype=np.int32)
    colors_p[:N, 0] = colors
    batch_p = np.full((1, N_pad), -1, dtype=np.int32)
    batch_p[0, :N] = batch

    hist_fn = _make_hist_fn(G_pad, C_pad, N_pad, tg, tc, tn)
    hist = hist_fn(jnp.asarray(colors_p), jnp.asarray(batch_p))
    return hist, G_pad, C_pad


@jax.jit
def _l2_normalize_rows(h):
    # Matches `out /= out.norm(dim=-1, keepdim=True)` except empty rows -> 0
    # instead of NaN (intentional divergence).
    sq = jnp.sum(h * h, axis=-1, keepdims=True)
    inv = jnp.where(sq > 0.0, lax.rsqrt(sq), 0.0)
    return h * inv


def wl_histogram_pallas(colors, batch, num_graphs, num_colors, norm):
    """colors, batch: 1-D int arrays of length N. Returns (num_graphs, num_colors) f32."""
    hist, _, _ = _hist_counts_padded(colors, batch, num_graphs, num_colors)
    if norm:
        hist = _l2_normalize_rows(hist)
    return hist[:num_graphs, :num_colors]


# ----------------------------------------------------------------------------
# Pallas kernel 2: scaled linear kernel
#   K[i, j] = scale_a[i] * scale_b[j] * <a[i], b[j]>
# Blocked (i, j, k) matmul, B pre-transposed once in the wrapper; the per-row
# normalization scales are folded into the last-k epilogue (no extra HBM pass).
# ----------------------------------------------------------------------------
def _gram_kernel(a_ref, bt_ref, sa_ref, sb_ref, o_ref):
    k = pl.program_id(2)

    @pl.when(k == 0)
    def _():
        o_ref[...] = jnp.zeros_like(o_ref)

    o_ref[...] += jnp.dot(a_ref[...], bt_ref[...],
                          preferred_element_type=jnp.float32)

    @pl.when(k == pl.num_programs(2) - 1)
    def _():
        o_ref[...] = o_ref[...] * (sa_ref[...] * sb_ref[...])


@functools.lru_cache(maxsize=None)
def _make_gram_fn(ma_p, mb_p, c_p, tm, tn, tk):
    call = pl.pallas_call(
        _gram_kernel,
        grid=(ma_p // tm, mb_p // tn, c_p // tk),
        in_specs=[
            pl.BlockSpec((tm, tk), lambda i, j, k: (i, k)),   # A
            pl.BlockSpec((tk, tn), lambda i, j, k: (k, j)),   # B^T
            pl.BlockSpec((tm, 1), lambda i, j, k: (i, 0)),    # row scales of A
            pl.BlockSpec((1, tn), lambda i, j, k: (0, j)),    # row scales of B
        ],
        out_specs=pl.BlockSpec((tm, tn), lambda i, j, k: (i, j)),
        out_shape=jax.ShapeDtypeStruct((ma_p, mb_p), jnp.float32),
        compiler_params=pltpu.CompilerParams(
            dimension_semantics=("parallel", "parallel", "arbitrary"),
            vmem_limit_bytes=32 * 1024 * 1024),
    )
    return jax.jit(call)


def linear_kernel_pallas(a, b, scale_a=None, scale_b=None):
    """a: (ma, c), b: (mb, c) (bf16 or f32) -> (ma, mb) f32
    K = diag(scale_a) @ (a @ b.T) @ diag(scale_b)."""
    a = jnp.asarray(a)
    b = jnp.asarray(b)
    ma, c = a.shape
    mb, cb = b.shape
    assert c == cb

    ma_p, tm = _pad_and_tile(ma, 16, 512)
    mb_p, tn = _pad_and_tile(mb, 128, 512)
    c_p, tk = _pad_and_tile(c, 128, 1024)

    a_p = jnp.pad(a, ((0, ma_p - ma), (0, c_p - c)))
    # Transpose B once so the kernel contraction is a plain (M,K)@(K,N).
    bt_p = jnp.pad(b, ((0, mb_p - mb), (0, c_p - c))).T          # (c_p, mb_p)

    if scale_a is None:
        scale_a = jnp.ones((ma, 1), jnp.float32)
    if scale_b is None:
        scale_b = jnp.ones((mb, 1), jnp.float32)
    sa = jnp.pad(jnp.asarray(scale_a, jnp.float32).reshape(ma, 1),
                 ((0, ma_p - ma), (0, 0)))                       # (ma_p, 1)
    sb = jnp.pad(jnp.asarray(scale_b, jnp.float32).reshape(mb, 1),
                 ((0, mb_p - mb), (0, 0))).T                     # (1, mb_p)

    gram_fn = _make_gram_fn(ma_p, mb_p, c_p, tm, tn, tk)
    out = gram_fn(a_p, bt_p, sa, sb)
    return out[:ma, :mb]


# ----------------------------------------------------------------------------
# Host-side WL color refinement (mirrors torch_geometric WLConv.forward)
# ----------------------------------------------------------------------------
def wl_refine(colors, edge_index, hashmap):
    colors = np.asarray(colors)
    src, dst = np.asarray(edge_index[0]), np.asarray(edge_index[1])
    N = colors.shape[0]
    neigh = [[] for _ in range(N)]
    for s, d in zip(src.tolist(), dst.tolist()):
        neigh[d].append(int(colors[s]))
    out = np.empty(N, dtype=np.int32)
    for i in range(N):
        key = (int(colors[i]), tuple(sorted(neigh[i])))
        if key not in hashmap:
            hashmap[key] = len(hashmap)
        out[i] = hashmap[key]
    return out


def kk(k_to_sample, stype, norm, i, *args):
    return '_'.join([str(s) for s in [*args, k_to_sample, stype, norm, i]])


# ----------------------------------------------------------------------------
# WL4S module (JAX / Pallas version). WLConv has no learnable parameters; its
# only state is the per-layer hashmap, initialized empty (deterministic).
# ----------------------------------------------------------------------------
class WL4S:
    def __init__(self, dataset_name, stype, num_layers, norm, dtype='histogram',
                 splits=None, k_to_sample=None, precompute=False):
        self.dataset_name = dataset_name
        self.stype = stype
        self.norm = norm
        self.dtype = dtype
        self.splits = splits
        self.precompute = precompute
        self.k_to_sample = k_to_sample
        self.num_layers = num_layers
        self.hashmaps = [dict() for _ in range(num_layers)]   # per-WLConv state

    def forward(self, x, edge_index, batch_or_sub_batch, x_to_xs=None, mask=None):
        x = np.asarray(x)
        if x.ndim > 1:                       # one-hot input -> color ids
            x = x.argmax(-1)
        colors = x
        hists_or_kernels = []
        for i in range(self.num_layers):
            colors = wl_refine(colors, edge_index, self.hashmaps[i])
            num_colors = len(self.hashmaps[i])

            if self.stype == 'connected':
                c = colors[np.asarray(x_to_xs)]
                b = np.asarray(batch_or_sub_batch)
            elif self.stype == 'separated':
                c, b = colors, np.asarray(batch_or_sub_batch)
                if mask is not None:
                    m = np.asarray(mask)
                    c, b = c[m], b[m]
            else:
                raise ValueError
            num_graphs = int(b.max()) + 1

            if self.dtype == 'kernel':
                s = self.splits
                _ = kk(self.k_to_sample, self.stype, self.norm, i)  # key (no disk cache)
                # Raw padded counts; no slice->repad round trip, no separate
                # normalization pass over the histogram.
                h_pad, G_pad, C_pad = _hist_counts_padded(c, b, num_graphs, num_colors)
                if self.norm:
                    sq = jnp.sum(h_pad * h_pad, axis=-1, keepdims=True)
                    inv_norm = jnp.where(sq > 0.0, lax.rsqrt(sq), 0.0)   # (G_pad, 1)
                else:
                    inv_norm = jnp.ones((G_pad, 1), jnp.float32)
                # bf16 Gram on integer counts is exact while every per-graph
                # per-color count <= 256 (bounded by the largest graph size).
                max_count = int(np.bincount(b, minlength=1).max())
                mat_dtype = jnp.bfloat16 if max_count <= 256 else jnp.float32
                A = h_pad[s[0]:s[3]].astype(mat_dtype)   # all rows vs ...
                B = h_pad[s[0]:s[1]].astype(mat_dtype)   # ... train rows (fused Gram)
                k_all = linear_kernel_pallas(A, B,
                                             scale_a=inv_norm[s[0]:s[3]],
                                             scale_b=inv_norm[s[0]:s[1]])
                n_tr, n_va = s[1] - s[0], s[2] - s[1]
                n_te = s[3] - s[2]
                h = (k_all[:n_tr],
                     k_all[n_tr:n_tr + n_va],
                     k_all[n_tr + n_va:n_tr + n_va + n_te])
                if self.precompute:
                    h = None
            else:
                h = wl_histogram_pallas(c, b, num_graphs, num_colors, self.norm)
            hists_or_kernels.append(h)
        return hists_or_kernels


# ----------------------------------------------------------------------------
# Demo / correctness check
# ----------------------------------------------------------------------------
def _np_histogram_ref(colors, batch, num_graphs, num_colors, norm):
    hist = np.zeros((num_graphs, num_colors), dtype=np.float64)
    for c, b in zip(colors, batch):
        hist[b, c] += 1.0
    if norm:
        n = np.linalg.norm(hist, axis=-1, keepdims=True)
        n = np.where(n > 0, n, 1.0)
        hist = hist / n
    return hist.astype(np.float32)


if __name__ == "__main__":
    key = jax.random.PRNGKey(0)
    num_graphs = 4
    nodes_per_graph = 6
    N = num_graphs * nodes_per_graph
    num_layers = 2

    k_colors, k_chords = jax.random.split(key)
    init_colors = np.asarray(jax.random.randint(k_colors, (N,), 0, 4), dtype=np.int32)
    batch = np.repeat(np.arange(num_graphs, dtype=np.int32), nodes_per_graph)

    # Undirected edges: ring per graph + 2 random chords per graph.
    src_list, dst_list = [], []
    chord_key = k_chords
    for g in range(num_graphs):
        base = g * nodes_per_graph
        for v in range(nodes_per_graph):
            u, w = base + v, base + (v + 1) % nodes_per_graph
            src_list += [u, w]
            dst_list += [w, u]
        chord_key, sub = jax.random.split(chord_key)
        picks = np.asarray(jax.random.randint(sub, (2, 2), 0, nodes_per_graph))
        for a_, b_ in picks:
            if int(a_) != int(b_):
                u, w = base + int(a_), base + int(b_)
                src_list += [u, w]
                dst_list += [w, u]
    edge_index = np.stack([np.array(src_list, np.int32), np.array(dst_list, np.int32)])

    # --- histogram mode -----------------------------------------------------
    model_h = WL4S('demo', stype='separated', num_layers=num_layers, norm=True,
                   dtype='histogram')
    hists = model_h.forward(init_colors, edge_index, batch)
    for h in hists:
        jax.block_until_ready(h)

    # host reference (re-run WL refinement with fresh hashmaps; deterministic)
    ref_hashmaps = [dict() for _ in range(num_layers)]
    colors_ref = init_colors
    for i in range(num_layers):
        colors_ref = wl_refine(colors_ref, edge_index, ref_hashmaps[i])
        ref_h = _np_histogram_ref(colors_ref, batch, num_graphs,
                                  len(ref_hashmaps[i]), norm=True)
        np.testing.assert_allclose(np.asarray(hists[i]), ref_h, rtol=1e-5, atol=1e-5)

    # --- kernel mode ----------------------------------------------------------
    splits = [0, 2, 3, 4]   # 2 train / 1 val / 1 test graphs
    model_k = WL4S('demo', stype='separated', num_layers=num_layers, norm=True,
                   dtype='kernel', splits=splits)
    kernels = model_k.forward(init_colors, edge_index, batch)
    for trio in kernels:
        for m in trio:
            jax.block_until_ready(m)

    # reference check for layer 0 Gram matrices
    colors_l0 = wl_refine(init_colors, edge_index, dict())
    h0 = _np_histogram_ref(colors_l0, batch, num_graphs,
                           len(set(colors_l0.tolist())), norm=True)
    tr, va, te = h0[splits[0]:splits[1]], h0[splits[1]:splits[2]], h0[splits[2]:splits[3]]
    np.testing.assert_allclose(np.asarray(kernels[0][0]), tr @ tr.T, rtol=1e-5, atol=1e-5)
    np.testing.assert_allclose(np.asarray(kernels[0][1]), va @ tr.T, rtol=1e-5, atol=1e-5)
    np.testing.assert_allclose(np.asarray(kernels[0][2]), te @ tr.T, rtol=1e-5, atol=1e-5)

    print("KERNEL_OK")
</pallas_src>

<mosaic_0001>
module attributes {stable_mosaic.version = 11 : i64} {
  func.func @_hist_kernel(%arg0: i32, %arg1: i32, %arg2: i32, %arg3: memref<128x1xi32, #tpu.memory_space<vmem>>, %arg4: memref<1x128xi32, #tpu.memory_space<vmem>>, %arg5: memref<16x128xf32, #tpu.memory_space<vmem>>) attributes {dimension_semantics = [#tpu.dimension_semantics<parallel>, #tpu.dimension_semantics<parallel>, #tpu.dimension_semantics<arbitrary>], iteration_bounds = array<i64: 1, 1, 1>, scalar_prefetch = 0 : i64, scratch_operands = 0 : i64, tpu.core_type = #tpu.core_type<tc>, window_params = [{transform_indices = @transform_0, window_bounds = array<i64: 128, 1>}, {transform_indices = @transform_1, window_bounds = array<i64: 1, 128>}, {transform_indices = @transform_2, window_bounds = array<i64: 16, 128>}]} {
    %c0_i32 = arith.constant 0 : i32
    %0 = arith.cmpi eq, %arg2, %c0_i32 : i32
    %1 = arith.extui %0 : i1 to i32
    %c0_i32_0 = arith.constant 0 : i32
    %2 = arith.cmpi ne, %1, %c0_i32_0 : i32
    scf.if %2 {
      %cst_8 = arith.constant 0.000000e+00 : f32
      %27 = vector.broadcast %cst_8 : f32 to vector<16x128xf32>
      %c0_9 = arith.constant 0 : index
      %c0_10 = arith.constant 0 : index
      %28 = vector.load %arg5[%c0_9, %c0_10] : memref<16x128xf32, #tpu.memory_space<vmem>>, vector<16x128xf32>
      tpu.vector_store %arg5[%c0_9, %c0_10], %27 {strides = array<i32>} : memref<16x128xf32, #tpu.memory_space<vmem>>, vector<16x128xf32>,
    } else {
    }
    %c16_i32 = arith.constant 16 : i32
    %3 = arith.muli %arg0, %c16_i32 : i32
    %c128_i32 = arith.constant 128 : i32
    %4 = arith.muli %arg1, %c128_i32 : i32
    %c0 = arith.constant 0 : index
    %c0_1 = arith.constant 0 : index
    %5 = vector.load %arg3[%c0, %c0_1] : memref<128x1xi32, #tpu.memory_space<vmem>>, vector<128x1xi32>
    %6 = vector.broadcast %4 : i32 to vector<128x1xi32>
    %7 = arith.subi %5, %6 : vector<128x1xi32>
    %c0_2 = arith.constant 0 : index
    %c0_3 = arith.constant 0 : index
    %8 = vector.load %arg4[%c0_2, %c0_3] : memref<1x128xi32, #tpu.memory_space<vmem>>, vector<1x128xi32>
    %9 = vector.broadcast %3 : i32 to vector<1x128xi32>
    %10 = arith.subi %8, %9 : vector<1x128xi32>
    %11 = tpu.iota {dimensions = array<i32: 1>} : vector<128x128xi32>
    %12 = vector.broadcast %7 : vector<128x1xi32> to vector<128x128xi32>
    %13 = arith.cmpi eq, %11, %12 : vector<128x128xi32>
    %14 = arith.extui %13 : vector<128x128xi1> to vector<128x128xi32>
    %15 = arith.sitofp %14 : vector<128x128xi32> to vector<128x128xf32>
    %16 = arith.truncf %15 : vector<128x128xf32> to vector<128x128xbf16>
    %17 = tpu.iota {dimensions = array<i32: 0>} : vector<16x128xi32>
    %18 = vector.broadcast %10 : vector<1x128xi32> to vector<16x128xi32>
    %19 = arith.cmpi eq, %17, %18 : vector<16x128xi32>
    %20 = arith.extui %19 : vector<16x128xi1> to vector<16x128xi32>
    %21 = arith.sitofp %20 : vector<16x128xi32> to vector<16x128xf32>
    %22 = arith.truncf %21 : vector<16x128xf32> to vector<16x128xbf16>
    %c0_4 = arith.constant 0 : index
    %c0_5 = arith.constant 0 : index
    %23 = vector.load %arg5[%c0_4, %c0_5] : memref<16x128xf32, #tpu.memory_space<vmem>>, vector<16x128xf32>
    %cst = arith.constant dense<0.000000e+00> : vector<16x128xf32>
    %24 = tpu.matmul %22, %16, %cst {dimension_numbers = #tpu.dot_dimension_numbers<[1], [0], [0], [1], [0, 0, 1, 1], [], []>} : vector<16x128xbf16>, vector<128x128xbf16>, vector<16x128xf32> -> vector<16x128xf32>
    %25 = arith.addf %23, %24 : vector<16x128xf32>
    %c0_6 = arith.constant 0 : index
    %c0_7 = arith.constant 0 : index
    %26 = vector.load %arg5[%c0_6, %c0_7] : memref<16x128xf32, #tpu.memory_space<vmem>>, vector<16x128xf32>
    tpu.vector_store %arg5[%c0_6, %c0_7], %25 {strides = array<i32>} : memref<16x128xf32, #tpu.memory_space<vmem>>, vector<16x128xf32>,
    return
  }
  func.func @transform_0(%arg0: i32, %arg1: i32, %arg2: i32) -> (i32, i32) {
    %c0_i32 = arith.constant 0 : i32
    %c0_i32_0 = arith.constant 0 : i32
    return %arg2, %c0_i32 : i32, i32
  }
  func.func @transform_1(%arg0: i32, %arg1: i32, %arg2: i32) -> (i32, i32) {
    %c0_i32 = arith.constant 0 : i32
    %c0_i32_0 = arith.constant 0 : i32
    return %c0_i32, %arg2 : i32, i32
  }
  func.func @transform_2(%arg0: i32, %arg1: i32, %arg2: i32) -> (i32, i32) {
    %c0_i32 = arith.constant 0 : i32
    return %arg0, %arg1 : i32, i32
  }
}

</mosaic_0001>

<llo_original>
// kernel: tpu_custom_call.1
$region0: #{tpu_custom_call.1}
  #allocation0 [shape = 'u32[]', space=smem, size = 0x4, offset = 0x4, fixed_abs, tag = 'smem constant byte address 0x4 - core index']
  #allocation1 [shape = 'u32[72,128]{1,0:T(1,128)}', space=vmem, size = 0x9000, scoped, tag = 'internal scratch']
  %s0 = inlined_call_operand.vmem [shape: s32[128,1], index: 0, kind: input, shape index: {}]
  %s1 = inlined_call_operand.vmem [shape: s32[1,128], index: 1, kind: input, shape index: {}]
  %s2 = inlined_call_operand.hbm [shape: f32[16,128], index: 2, kind: output, shape index: {}]
  %s3 = sld [smem:[#allocation0]]
  $region22: #{tpu_custom_call.1} parent=0
    _
  %s5 = ssub.s32 1, %s3
  %s6 = scalar_select 0, %s5, %s3
  $region1: #{tpu_custom_call.1} parent=0
    #allocation2 [shape = 'u8[8192]{0}', space=vmem, size = 0x2000, scoped, tag = 'output window, operand 0, single buffered']
    #allocation3 [shape = 's32[1]{0}', space=sflag, size = 0x4, scoped, tag = 'scoped memory for tpu_custom_call.1']
    %7 = vsyncpa [#allocation3], 0
    // Predicated region
    $region2: #{tpu_custom_call.1} parent=1 // pred_check
      _
    $region3: #{tpu_custom_call.1} parent=1 // pred_check_branch
      %9 = sbr.rel (0) target = $region5
    $region4: #{tpu_custom_call.1} parent=1 // pred_region
      _
    $region5: #{tpu_custom_call.1} parent=1 // pred_fallthru
      _
    // Predicated region
    $region6: #{tpu_custom_call.1} parent=1 // pred_check
      _
    $region7: #{tpu_custom_call.1} parent=1 // pred_check_branch
      %11 = sbr.rel (0) target = $region9
    $region8: #{tpu_custom_call.1} parent=1 // pred_region
      _
    $region9: #{tpu_custom_call.1} parent=1 // pred_fallthru
      _
    %p12 = scmp.eq.s32.totalorder 0, 0
    // Predicated region
    $region10: #{tpu_custom_call.1} parent=1 // pred_check
      %p13 = pneg %p12
    $region11: #{tpu_custom_call.1} parent=1 // pred_check_branch
      %15 = sbr.rel (%p13) target = $region13
    $region12: #{tpu_custom_call.1} parent=1 // pred_region
      %16 = vst [vmem:[#allocation2] sm:$0xff] 0.0
      %17 = vst [vmem:[#allocation2 + $0x8] sm:$0xff] 0.0
    $region13: #{tpu_custom_call.1} parent=1 // pred_fallthru
      _
    %s18 = smul.u32 0, 16
    %s19 = smul.u32 0, 128
    %v20 = vld [vmem:[%s0] sm:$0xff]
    %v21 = vld [vmem:[%s0 + $0x8] sm:$0xff]
    %v22 = vld [vmem:[%s0 + $0x10] sm:$0xff]
    %v23 = vld [vmem:[%s0 + $0x18] sm:$0xff]
    %v24 = vld [vmem:[%s0 + $0x20] sm:$0xff]
    %v25 = vld [vmem:[%s0 + $0x28] sm:$0xff]
    %v26 = vld [vmem:[%s0 + $0x30] sm:$0xff]
    %v27 = vld [vmem:[%s0 + $0x38] sm:$0xff]
    %v28 = vld [vmem:[%s0 + $0x40] sm:$0xff]
    %v29 = vld [vmem:[%s0 + $0x48] sm:$0xff]
    %v30 = vld [vmem:[%s0 + $0x50] sm:$0xff]
    %v31 = vld [vmem:[%s0 + $0x58] sm:$0xff]
    %v32 = vld [vmem:[%s0 + $0x60] sm:$0xff]
    %v33 = vld [vmem:[%s0 + $0x68] sm:$0xff]
    %v34 = vld [vmem:[%s0 + $0x70] sm:$0xff]
    %v35 = vld [vmem:[%s0 + $0x78] sm:$0xff]
    %v36 = vstv %s19
    %v37 = vsub.s32 %v20, %v36
    %v38 = vsub.s32 %v21, %v36
    %v39 = vsub.s32 %v22, %v36
    %v40 = vsub.s32 %v23, %v36
    %v41 = vsub.s32 %v24, %v36
    %v42 = vsub.s32 %v25, %v36
    %v43 = vsub.s32 %v26, %v36
    %v44 = vsub.s32 %v27, %v36
    %v45 = vsub.s32 %v28, %v36
    %v46 = vsub.s32 %v29, %v36
    %v47 = vsub.s32 %v30, %v36
    %v48 = vsub.s32 %v31, %v36
    %v49 = vsub.s32 %v32, %v36
    %v50 = vsub.s32 %v33, %v36
    %v51 = vsub.s32 %v34, %v36
    %v52 = vsub.s32 %v35, %v36
    %v53 = vld [vmem:[%s1] sm:$0x1]
    %v54 = vstv %s18
    %v55 = vsub.s32 %v53, %v54
    %v56 = vlaneseq
    %v57 = vand.u32 %v56, 127
    %58 = vset.pattern.permute.xlu0 0
    %59 = vperm.xlu0 %58, %v37
    %v60 = vpop.permute.xlu0 %59
    %61 = vset.pattern.permute.xlu0 0
    %62 = vperm.xlu0 %61, %v38
    %v63 = vpop.permute.xlu0 %62
    %64 = vset.pattern.permute.xlu0 0
    %65 = vperm.xlu0 %64, %v39
    %v66 = vpop.permute.xlu0 %65
    %67 = vset.pattern.permute.xlu0 0
    %68 = vperm.xlu0 %67, %v40
    %v69 = vpop.permute.xlu0 %68
    %70 = vset.pattern.permute.xlu0 0
    %71 = vperm.xlu0 %70, %v41
    %v72 = vpop.permute.xlu0 %71
    %73 = vset.pattern.permute.xlu0 0
    %74 = vperm.xlu0 %73, %v42
    %v75 = vpop.permute.xlu0 %74
    %76 = vset.pattern.permute.xlu0 0
    %77 = vperm.xlu0 %76, %v43
    %v78 = vpop.permute.xlu0 %77
    %79 = vset.pattern.permute.xlu0 0
    %80 = vperm.xlu0 %79, %v44
    %v81 = vpop.permute.xlu0 %80
    %82 = vset.pattern.permute.xlu0 0
    %83 = vperm.xlu0 %82, %v45
    %v84 = vpop.permute.xlu0 %83
    %85 = vset.pattern.permute.xlu0 0
    %86 = vperm.xlu0 %85, %v46
    %v87 = vpop.permute.xlu0 %86
    %88 = vset.pattern.permute.xlu0 0
    %89 = vperm.xlu0 %88, %v47
    %v90 = vpop.permute.xlu0 %89
    %91 = vset.pattern.permute.xlu0 0
    %92 = vperm.xlu0 %91, %v48
    %v93 = vpop.permute.xlu0 %92
    %94 = vset.pattern.permute.xlu0 0
    %95 = vperm.xlu0 %94, %v49
    %v96 = vpop.permute.xlu0 %95
    %97 = vset.pattern.permute.xlu0 0
    %98 = vperm.xlu0 %97, %v50
    %v99 = vpop.permute.xlu0 %98
    %100 = vset.pattern.permute.xlu0 0
    %101 = vperm.xlu0 %100, %v51
    %v102 = vpop.permute.xlu0 %101
    %103 = vset.pattern.permute.xlu0 0
    %104 = vperm.xlu0 %103, %v52
    %v105 = vpop.permute.xlu0 %104
    %vm106 = vcmp.eq.s32.totalorder %v57, %v60
    %vm107 = vcmp.eq.s32.totalorder %v57, %v63
    %vm108 = vcmp.eq.s32.totalorder %v57, %v66
    %vm109 = vcmp.eq.s32.totalorder %v57, %v69
    %vm110 = vcmp.eq.s32.totalorder %v57, %v72
    %vm111 = vcmp.eq.s32.totalorder %v57, %v75
    %vm112 = vcmp.eq.s32.totalorder %v57, %v78
    %vm113 = vcmp.eq.s32.totalorder %v57, %v81
    %vm114 = vcmp.eq.s32.totalorder %v57, %v84
    %vm115 = vcmp.eq.s32.totalorder %v57, %v87
    %vm116 = vcmp.eq.s32.totalorder %v57, %v90
    %vm117 = vcmp.eq.s32.totalorder %v57, %v93
    %vm118 = vcmp.eq.s32.totalorder %v57, %v96
    %vm119 = vcmp.eq.s32.totalorder %v57, %v99
    %vm120 = vcmp.eq.s32.totalorder %v57, %v102
    %vm121 = vcmp.eq.s32.totalorder %v57, %v105
    %v122 = vsel %vm106, 1, 0
    %v123 = vsel %vm107, 1, 0
    %v124 = vsel %vm108, 1, 0
    %v125 = vsel %vm109, 1, 0
    %v126 = vsel %vm110, 1, 0
    %v127 = vsel %vm111, 1, 0
    %v128 = vsel %vm112, 1, 0
    %v129 = vsel %vm113, 1, 0
    %v130 = vsel %vm114, 1, 0
    %v131 = vsel %vm115, 1, 0
    %v132 = vsel %vm116, 1, 0
    %v133 = vsel %vm117, 1, 0
    %v134 = vsel %vm118, 1, 0
    %v135 = vsel %vm119, 1, 0
    %v136 = vsel %vm120, 1, 0
    %v137 = vsel %vm121, 1, 0
    %v138 = vcvt.s32.f32 %v122
    %v139 = vcvt.s32.f32 %v123
    %v140 = vcvt.s32.f32 %v124
    %v141 = vcvt.s32.f32 %v125
    %v142 = vcvt.s32.f32 %v126
    %v143 = vcvt.s32.f32 %v127
    %v144 = vcvt.s32.f32 %v128
    %v145 = vcvt.s32.f32 %v129
    %v146 = vcvt.s32.f32 %v130
    %v147 = vcvt.s32.f32 %v131
    %v148 = vcvt.s32.f32 %v132
    %v149 = vcvt.s32.f32 %v133
    %v150 = vcvt.s32.f32 %v134
    %v151 = vcvt.s32.f32 %v135
    %v152 = vcvt.s32.f32 %v136
    %v153 = vcvt.s32.f32 %v137
    %v154 = vpack.c.bf16 %v139, %v138
    %v155 = vpack.c.bf16 %v141, %v140
    %v156 = vpack.c.bf16 %v143, %v142
    %v157 = vpack.c.bf16 %v145, %v144
    %v158 = vpack.c.bf16 %v147, %v146
    %v159 = vpack.c.bf16 %v149, %v148
    %v160 = vpack.c.bf16 %v151, %v150
    %v161 = vpack.c.bf16 %v153, %v152
    %v162 = vlaneseq
    %v163 = vshrl.u32 %v162, 7
    %v164 = vadd.s32 %v163, 8
    %v165 = vperm.slane %v55, 0
    %vm166 = vcmp.eq.s32.totalorder %v163, %v165
    %vm167 = vcmp.eq.s32.totalorder %v164, %v165
    %v168 = vsel %vm166, 1, 0
    %v169 = vsel %vm167, 1, 0
    %v170 = vcvt.s32.f32 %v168
    %v171 = vcvt.s32.f32 %v169
    %v172 = vpack.c.bf16 %v171, %v170
    %v173 = vld [vmem:[#allocation2] sm:$0xff]
    %v174 = vld [vmem:[#allocation2 + $0x8] sm:$0xff]
    %175 = vmatpush.bf16.msra.mxu0 %v161
    %176 = vmatpush.bf16.msra.mxu0 %v160
    %177 = vmatpush.bf16.msra.mxu0 %v159
    %178 = vmatpush.bf16.msra.mxu0 %v158
    %179 = vmatpush.bf16.msra.mxu0 %v157
    %180 = vmatpush.bf16.msra.mxu0 %v156
    %181 = vmatpush.bf16.msra.mxu0 %v155
    %182 = vmatpush.bf16.msra.mxu0 %v154
    %183 = vmatmul.bf16.gmra.mxu0 %v172
    %v184 = vpop.f32.mrf.mxu0
    %v185 = vadd.f32 0.0, %v184
    %v186 = vpop.f32.mrf.mxu0
    %v187 = vadd.f32 0.0, %v186
    %188 = vdwg.mxu0
    %v189 = vadd.f32 %v173, %v185
    %v190 = vadd.f32 %v174, %v187
    %191 = vst [vmem:[#allocation2] sm:$0xff] %v189
    %192 = vst [vmem:[#allocation2 + $0x8] sm:$0xff] %v190
    // Predicated region
    $region14: #{tpu_custom_call.1} parent=1 // pred_check
      _
    $region15: #{tpu_custom_call.1} parent=1 // pred_check_branch
      %194 = sbr.rel (0) target = $region17
    $region16: #{tpu_custom_call.1} parent=1 // pred_region
      %196 = vsyncadd [#allocation3], 0
      %s197 = sshll.u32 [#allocation2], 4
      %s198 = int_to_ptr.vmem [resolvable:$true] %s197
      %s199 = sshll.u32 %s2, 4
      %s200 = int_to_ptr.hbm [resolvable:$true] %s199
      %205 = dma.vmem_to_hbm [thread:$0]  %s198, 256, %s200, [#allocation3], 128, 128, 8
    $region17: #{tpu_custom_call.1} parent=1 // pred_fallthru
      _
    // Predicated region
    $region18: #{tpu_custom_call.1} parent=1 // pred_check
      _
    $region19: #{tpu_custom_call.1} parent=1 // pred_check_branch
      %207 = sbr.rel (0) target = $region21
    $region20: #{tpu_custom_call.1} parent=1 // pred_region
      %209 = dma.done [#allocation3], 256
    $region21: #{tpu_custom_call.1} parent=1 // pred_fallthru
      _
    %210 = vsyncpa [#allocation3], 1

</llo_original>
